<compile_context>
chip_gen: v7x
topology: tpu7x:2x2x1
jax: 0.10.0
libtpu: 0.0.40
codegen_flags: <defaults>
</compile_context>

<pallas_src>
import jax
import jax.numpy as jnp
from jax.experimental import pallas as pl
from jax.experimental.pallas import tpu as pltpu


def _round_up(x, m):
    return ((x + m - 1) // m) * m


def _minimal_net_kernel(x_ref, w1_ref, b1_ref, w2_ref, b2_ref, o_ref):
    """Fused MinimalNetL96 forward: o = concat[(x@W1+b1)^2, x] @ W2 + b2."""
    x = x_ref[...]                                                    # (TB, Ni)
    h = jnp.dot(x, w1_ref[...],
                preferred_element_type=jnp.float32) + b1_ref[...]     # (TB, Nh)
    z = h * h                                                         # pointwise square
    zx = jnp.concatenate([z, x.astype(jnp.float32)], axis=1)          # (TB, 4*Ni)
    out = jnp.dot(zx, w2_ref[...], preferred_element_type=jnp.float32)
    o_ref[...] = (out + b2_ref[...]).astype(o_ref.dtype)              # (TB, Ni)


def prepare_minimal_net_params(w1, b1, w2, b2):
    """One-time re-layout of PyTorch-layout parameters (call once per model)."""
    Nh, Ni = w1.shape
    assert Nh == 3 * Ni, "skip_conn=False (Nh=4*Ni) not supported"  # TODO(synk)
    assert w2.shape == (Ni, 4 * Ni)
    return (jnp.asarray(w1).T,                # (Ni, Nh)   layer1, (in, out)
            jnp.asarray(b1).reshape(1, Nh),   # (1, Nh)
            jnp.asarray(w2).T,                # (4*Ni, Ni) layer2, (in, out)
            jnp.asarray(b2).reshape(1, Ni))   # (1, Ni)


def minimal_net_l96_apply(x, params, *, tile_b=1024):
    """MinimalNetL96.forward (skip_conn=True) on pre-layouted params.

    Args:
      x:      (B, Ni) or (Ni,) L96 state, Ni = K*(J+1).
      params: output of prepare_minimal_net_params.
      tile_b: max batch-tile rows (cap ~1024 keeps v5e's 16 MiB scoped VMEM happy).
    """
    w1_t, b1_2d, w2_t, b2_2d = params
    squeeze = x.ndim == 1
    x2 = x.reshape(1, -1) if squeeze else x
    B, Ni = x2.shape
    Nh = w1_t.shape[1]
    K2 = w2_t.shape[0]                        # 4*Ni

    # Tile selection:
    #  * small batches -> single grid step over the whole batch;
    #  * larger batches -> >=2 grid steps (feeds both v7x TensorCores via the
    #    "parallel" axis) and the ragged last block is clipped by Pallas.
    if B <= 256:
        tb = B
    else:
        tb = min(tile_b, _round_up(pl.cdiv(B, 2), 8))
    grid = (pl.cdiv(B, tb),)

    flops = 2 * B * Ni * (Nh + K2) + B * Nh
    bytes_accessed = 4 * (2 * B * Ni + Ni * Nh + K2 * Ni + Nh + Ni)

    out = pl.pallas_call(
        _minimal_net_kernel,
        out_shape=jax.ShapeDtypeStruct((B, Ni), x2.dtype),
        grid=grid,
        in_specs=[
            pl.BlockSpec((tb, Ni), lambda i: (i, 0)),   # x   (batch-tiled, streamed)
            pl.BlockSpec((Ni, Nh), lambda i: (0, 0)),   # W1^T (resident)
            pl.BlockSpec((1, Nh), lambda i: (0, 0)),    # b1
            pl.BlockSpec((K2, Ni), lambda i: (0, 0)),   # W2^T (resident)
            pl.BlockSpec((1, Ni), lambda i: (0, 0)),    # b2
        ],
        out_specs=pl.BlockSpec((tb, Ni), lambda i: (i, 0)),
        compiler_params=pltpu.CompilerParams(
            dimension_semantics=("parallel",)),
        cost_estimate=pl.CostEstimate(
            flops=flops, transcendentals=0, bytes_accessed=bytes_accessed),
    )(x2, w1_t, b1_2d, w2_t, b2_2d)

    return out.reshape(-1) if squeeze else out


def minimal_net_l96(x, w1, b1, w2, b2, *, tile_b=1024):
    """Convenience wrapper taking PyTorch-layout params (re-layouts per call).

    For rollout / time-stepping loops prefer:
        params = prepare_minimal_net_params(w1, b1, w2, b2)   # once
        y = minimal_net_l96_apply(x, params)                  # per step
    """
    return minimal_net_l96_apply(
        x, prepare_minimal_net_params(w1, b1, w2, b2), tile_b=tile_b)


def _reference(x, w1, b1, w2, b2):
    """Pure-JAX mirror of MinimalNetL96.forward (skip_conn=True)."""
    x2 = x.reshape(1, -1) if x.ndim == 1 else x
    h = jnp.dot(x2, w1.T, precision=jax.lax.Precision.HIGHEST) + b1
    z = h * h
    z = jnp.concatenate([z, x2], axis=1)
    out = jnp.dot(z, w2.T, precision=jax.lax.Precision.HIGHEST) + b2
    return out.reshape(-1) if x.ndim == 1 else out


if __name__ == "__main__":
    # Small shapes consistent with the module: K=128, J=0 -> Ni=128, Nh=384.
    K, J = 128, 0
    Ni = K * (J + 1)
    Nh = 3 * Ni

    key = jax.random.PRNGKey(0)
    kx, k1, k2, k3, k4, kx2 = jax.random.split(key, 6)

    # Deterministic small-scale parameter init (module default init='rand').
    w1 = 0.05 * jax.random.normal(k1, (Nh, Ni), dtype=jnp.float32)
    b1 = 0.01 * jax.random.normal(k2, (Nh,), dtype=jnp.float32)
    w2 = 0.05 * jax.random.normal(k3, (Ni, 4 * Ni), dtype=jnp.float32)
    b2 = 0.01 * jax.random.normal(k4, (Ni,), dtype=jnp.float32)
    params = prepare_minimal_net_params(w1, b1, w2, b2)

    # 1) small batch -> single grid step.
    x_small = jax.random.normal(kx, (8, Ni), dtype=jnp.float32)
    out_s = jax.block_until_ready(minimal_net_l96_apply(x_small, params))
    ref_s = jax.block_until_ready(_reference(x_small, w1, b1, w2, b2))
    assert out_s.shape == (8, Ni) and out_s.dtype == jnp.float32
    assert jnp.allclose(out_s, ref_s, atol=2e-4, rtol=2e-4), "small-batch mismatch"

    # 2) mid batch, not a multiple of the tile -> >=2 parallel steps + ragged
    #    last block exercised.
    x_mid = jax.random.normal(kx2, (300, Ni), dtype=jnp.float32)
    out_m = jax.block_until_ready(minimal_net_l96_apply(x_mid, params))
    ref_m = jax.block_until_ready(_reference(x_mid, w1, b1, w2, b2))
    assert out_m.shape == (300, Ni) and out_m.dtype == jnp.float32
    assert jnp.allclose(out_m, ref_m, atol=2e-4, rtol=2e-4), "mid-batch mismatch"

    print("KERNEL_OK")
</pallas_src>

<mosaic_0001>
module attributes {stable_mosaic.version = 11 : i64} {
  func.func @_minimal_net_kernel(%arg0: i32, %arg1: memref<8x128xf32, #tpu.memory_space<vmem>>, %arg2: memref<128x384xf32, #tpu.memory_space<vmem>>, %arg3: memref<1x384xf32, #tpu.memory_space<vmem>>, %arg4: memref<512x128xf32, #tpu.memory_space<vmem>>, %arg5: memref<1x128xf32, #tpu.memory_space<vmem>>, %arg6: memref<8x128xf32, #tpu.memory_space<vmem>>) attributes {dimension_semantics = [#tpu.dimension_semantics<parallel>], iteration_bounds = array<i64: 1>, scalar_prefetch = 0 : i64, scratch_operands = 0 : i64, tpu.core_type = #tpu.core_type<tc>, window_params = [{transform_indices = @transform_0, window_bounds = array<i64: 8, 128>}, {pipeline_mode = #tpu.pipeline_mode<synchronous>, transform_indices = @transform_1, window_bounds = array<i64: 128, 384>}, {pipeline_mode = #tpu.pipeline_mode<synchronous>, transform_indices = @transform_2, window_bounds = array<i64: 1, 384>}, {pipeline_mode = #tpu.pipeline_mode<synchronous>, transform_indices = @transform_3, window_bounds = array<i64: 512, 128>}, {pipeline_mode = #tpu.pipeline_mode<synchronous>, transform_indices = @transform_4, window_bounds = array<i64: 1, 128>}, {transform_indices = @transform_5, window_bounds = array<i64: 8, 128>}]} {
    %c0 = arith.constant 0 : index
    %c0_0 = arith.constant 0 : index
    %0 = vector.load %arg1[%c0, %c0_0] : memref<8x128xf32, #tpu.memory_space<vmem>>, vector<8x128xf32>
    %c0_1 = arith.constant 0 : index
    %c0_2 = arith.constant 0 : index
    %1 = vector.load %arg2[%c0_1, %c0_2] : memref<128x384xf32, #tpu.memory_space<vmem>>, vector<128x384xf32>
    %cst = arith.constant dense<0.000000e+00> : vector<8x384xf32>
    %2 = tpu.matmul %0, %1, %cst {dimension_numbers = #tpu.dot_dimension_numbers<[1], [0], [0], [1], [0, 0, 1, 1], [], []>} : vector<8x128xf32>, vector<128x384xf32>, vector<8x384xf32> -> vector<8x384xf32>
    %c0_3 = arith.constant 0 : index
    %c0_4 = arith.constant 0 : index
    %3 = vector.load %arg3[%c0_3, %c0_4] : memref<1x384xf32, #tpu.memory_space<vmem>>, vector<1x384xf32>
    %4 = vector.broadcast %3 : vector<1x384xf32> to vector<8x384xf32>
    %5 = arith.addf %2, %4 : vector<8x384xf32>
    %6 = arith.mulf %5, %5 : vector<8x384xf32>
    %7 = tpu.concatenate %6, %0 in 1 : vector<8x384xf32>, vector<8x128xf32> -> vector<8x512xf32>
    %c0_5 = arith.constant 0 : index
    %c0_6 = arith.constant 0 : index
    %8 = vector.load %arg4[%c0_5, %c0_6] : memref<512x128xf32, #tpu.memory_space<vmem>>, vector<512x128xf32>
    %cst_7 = arith.constant dense<0.000000e+00> : vector<8x128xf32>
    %9 = tpu.matmul %7, %8, %cst_7 {dimension_numbers = #tpu.dot_dimension_numbers<[1], [0], [0], [1], [0, 0, 1, 1], [], []>} : vector<8x512xf32>, vector<512x128xf32>, vector<8x128xf32> -> vector<8x128xf32>
    %c0_8 = arith.constant 0 : index
    %c0_9 = arith.constant 0 : index
    %10 = vector.load %arg5[%c0_8, %c0_9] : memref<1x128xf32, #tpu.memory_space<vmem>>, vector<1x128xf32>
    %11 = vector.broadcast %10 : vector<1x128xf32> to vector<8x128xf32>
    %12 = arith.addf %9, %11 : vector<8x128xf32>
    %c0_10 = arith.constant 0 : index
    %c0_11 = arith.constant 0 : index
    %13 = vector.load %arg6[%c0_10, %c0_11] : memref<8x128xf32, #tpu.memory_space<vmem>>, vector<8x128xf32>
    tpu.vector_store %arg6[%c0_10, %c0_11], %12 {strides = array<i32>} : memref<8x128xf32, #tpu.memory_space<vmem>>, vector<8x128xf32>,
    return
  }
  func.func @transform_0(%arg0: i32) -> (i32, i32) {
    %c0_i32 = arith.constant 0 : i32
    %c0_i32_0 = arith.constant 0 : i32
    return %arg0, %c0_i32 : i32, i32
  }
  func.func @transform_1(%arg0: i32) -> (i32, i32) {
    %c0_i32 = arith.constant 0 : i32
    %c0_i32_0 = arith.constant 0 : i32
    %c0_i32_1 = arith.constant 0 : i32
    return %c0_i32, %c0_i32_0 : i32, i32
  }
  func.func @transform_2(%arg0: i32) -> (i32, i32) {
    %c0_i32 = arith.constant 0 : i32
    %c0_i32_0 = arith.constant 0 : i32
    %c0_i32_1 = arith.constant 0 : i32
    return %c0_i32, %c0_i32_0 : i32, i32
  }
  func.func @transform_3(%arg0: i32) -> (i32, i32) {
    %c0_i32 = arith.constant 0 : i32
    %c0_i32_0 = arith.constant 0 : i32
    %c0_i32_1 = arith.constant 0 : i32
    return %c0_i32, %c0_i32_0 : i32, i32
  }
  func.func @transform_4(%arg0: i32) -> (i32, i32) {
    %c0_i32 = arith.constant 0 : i32
    %c0_i32_0 = arith.constant 0 : i32
    %c0_i32_1 = arith.constant 0 : i32
    return %c0_i32, %c0_i32_0 : i32, i32
  }
  func.func @transform_5(%arg0: i32) -> (i32, i32) {
    %c0_i32 = arith.constant 0 : i32
    %c0_i32_0 = arith.constant 0 : i32
    return %arg0, %c0_i32 : i32, i32
  }
}

</mosaic_0001>

<llo_original>
// kernel: tpu_custom_call.1
$region0: #{tpu_custom_call.1}
  #allocation0 [shape = 'u32[]', space=smem, size = 0x4, offset = 0x4, fixed_abs, tag = 'smem constant byte address 0x4 - core index']
  #allocation1 [shape = 'u32[144,128]{1,0:T(1,128)}', space=vmem, size = 0x12000, scoped, tag = 'internal scratch']
  %s0 = inlined_call_operand.hbm [shape: f32[8,128], index: 0, kind: input, shape index: {}]
  %s1 = inlined_call_operand.hbm [shape: f32[128,384], index: 1, kind: input, shape index: {}]
  %s2 = inlined_call_operand.vmem [shape: f32[1,384], index: 2, kind: input, shape index: {}]
  %s3 = inlined_call_operand.hbm [shape: f32[512,128], index: 3, kind: input, shape index: {}]
  %s4 = inlined_call_operand.vmem [shape: f32[1,128], index: 4, kind: input, shape index: {}]
  %s5 = inlined_call_operand.hbm [shape: f32[8,128], index: 5, kind: output, shape index: {}]
  %s6 = sld [smem:[#allocation0]]
  $region42: #{tpu_custom_call.1} parent=0
    _
  %s8 = ssub.s32 1, %s6
  %s9 = scalar_select 0, %s8, %s6
  $region1: #{tpu_custom_call.1} parent=0
    #allocation2 [shape = 'u8[4096]{0}', space=vmem, size = 0x1000, scoped, tag = 'input window, operand 0, single buffered']
    #allocation3 [shape = 's32[1]{0}', space=sflag, size = 0x4, scoped, tag = 'scoped memory for tpu_custom_call.1']
    #allocation4 [shape = 's32[1]{0}', space=sflag, size = 0x4, scoped, tag = 'scoped memory for tpu_custom_call.1']
    #allocation5 [shape = 'u8[196608]{0}', space=vmem, size = 0x30000, scoped, tag = 'input window, operand 1, single buffered']
    #allocation6 [shape = 's32[1]{0}', space=sflag, size = 0x4, scoped, tag = 'scoped memory for tpu_custom_call.1']
    #allocation7 [shape = 'u8[262144]{0}', space=vmem, size = 0x40000, scoped, tag = 'input window, operand 3, single buffered']
    #allocation8 [shape = 'u8[4096]{0}', space=vmem, size = 0x1000, scoped, tag = 'output window, operand 0, single buffered']
    %10 = vsyncpa [#allocation3], 0
    %11 = vsyncpa [#allocation6], 0
    %12 = vsyncpa [#allocation4], 0
    // Predicated region
    $region2: #{tpu_custom_call.1} parent=1 // pred_check
      _
    $region3: #{tpu_custom_call.1} parent=1 // pred_check_branch
      %14 = sbr.rel (0) target = $region5
    $region4: #{tpu_custom_call.1} parent=1 // pred_region
      %s16 = ssub.s32 128, 128
      %17 = vsyncadd [#allocation3], %s16
      %s19 = sshll.u32 [#allocation2], 4
      %s20 = int_to_ptr.vmem [resolvable:$true] %s19
      %22 = dma.hbm_to_vmem [thread:$0]  %s0, 128, %s20, [#allocation3]
    $region5: #{tpu_custom_call.1} parent=1 // pred_fallthru
      _
    // Predicated region
    $region6: #{tpu_custom_call.1} parent=1 // pred_check
      _
    $region7: #{tpu_custom_call.1} parent=1 // pred_check_branch
      %24 = sbr.rel (0) target = $region9
    $region8: #{tpu_custom_call.1} parent=1 // pred_region
      %s26 = ssub.s32 6144, 6144
      %27 = vsyncadd [#allocation6], %s26
      %s28 = sshll.u32 [#allocation5], 4
      %s29 = int_to_ptr.vmem [resolvable:$true] %s28
      %34 = dma.hbm_to_vmem [thread:$0]  %s1, 6144, %s29, [#allocation6], 384, 384, 24
    $region9: #{tpu_custom_call.1} parent=1 // pred_fallthru
      _
    // Predicated region
    $region10: #{tpu_custom_call.1} parent=1 // pred_check
      _
    $region11: #{tpu_custom_call.1} parent=1 // pred_check_branch
      %36 = sbr.rel (0) target = $region13
    $region12: #{tpu_custom_call.1} parent=1 // pred_region
      _
    $region13: #{tpu_custom_call.1} parent=1 // pred_fallthru
      _
    // Predicated region
    $region14: #{tpu_custom_call.1} parent=1 // pred_check
      _
    $region15: #{tpu_custom_call.1} parent=1 // pred_check_branch
      %38 = sbr.rel (0) target = $region17
    $region16: #{tpu_custom_call.1} parent=1 // pred_region
      %s40 = ssub.s32 8192, 8192
      %41 = vsyncadd [#allocation6], %s40
      %s42 = sshll.u32 [#allocation7], 4
      %s43 = int_to_ptr.vmem [resolvable:$true] %s42
      %48 = dma.hbm_to_vmem [thread:$0]  %s3, 8192, %s43, [#allocation6], 128, 128, 8
    $region17: #{tpu_custom_call.1} parent=1 // pred_fallthru
      _
    // Predicated region
    $region18: #{tpu_custom_call.1} parent=1 // pred_check
      _
    $region19: #{tpu_custom_call.1} parent=1 // pred_check_branch
      %50 = sbr.rel (0) target = $region21
    $region20: #{tpu_custom_call.1} parent=1 // pred_region
      _
    $region21: #{tpu_custom_call.1} parent=1 // pred_fallthru
      _
    // Predicated region
    $region22: #{tpu_custom_call.1} parent=1 // pred_check
      _
    $region23: #{tpu_custom_call.1} parent=1 // pred_check_branch
      %52 = sbr.rel (0) target = $region25
    $region24: #{tpu_custom_call.1} parent=1 // pred_region
      %53 = dma.done [#allocation3], 128
    $region25: #{tpu_custom_call.1} parent=1 // pred_fallthru
      _
    // Predicated region
    $region26: #{tpu_custom_call.1} parent=1 // pred_check
      _
    $region27: #{tpu_custom_call.1} parent=1 // pred_check_branch
      %55 = sbr.rel (0) target = $region29
    $region28: #{tpu_custom_call.1} parent=1 // pred_region
      %56 = dma.done [#allocation6], 6144
    $region29: #{tpu_custom_call.1} parent=1 // pred_fallthru
      _
    // Predicated region
    $region30: #{tpu_custom_call.1} parent=1 // pred_check
      _
    $region31: #{tpu_custom_call.1} parent=1 // pred_check_branch
      %58 = sbr.rel (0) target = $region33
    $region32: #{tpu_custom_call.1} parent=1 // pred_region
      %59 = dma.done [#allocation6], 8192
    $region33: #{tpu_custom_call.1} parent=1 // pred_fallthru
      _
    %v60 = vld [vmem:[#allocation2] sm:$0xff]
    %v61 = vld [vmem:[#allocation5] sm:$0xff]
    %v62 = vld [vmem:[#allocation5 + $0x8] sm:$0xff]
    %v63 = vld [vmem:[#allocation5 + $0x10] sm:$0xff]
    %v64 = vld [vmem:[#allocation5 + $0x18] sm:$0xff]
    %v65 = vld [vmem:[#allocation5 + $0x20] sm:$0xff]
    %v66 = vld [vmem:[#allocation5 + $0x28] sm:$0xff]
    %v67 = vld [vmem:[#allocation5 + $0x30] sm:$0xff]
    %v68 = vld [vmem:[#allocation5 + $0x38] sm:$0xff]
    %v69 = vld [vmem:[#allocation5 + $0x40] sm:$0xff]
    %v70 = vld [vmem:[#allocation5 + $0x48] sm:$0xff]
    %v71 = vld [vmem:[#allocation5 + $0x50] sm:$0xff]
    %v72 = vld [vmem:[#allocation5 + $0x58] sm:$0xff]
    %v73 = vld [vmem:[#allocation5 + $0x60] sm:$0xff]
    %v74 = vld [vmem:[#allocation5 + $0x68] sm:$0xff]
    %v75 = vld [vmem:[#allocation5 + $0x70] sm:$0xff]
    %v76 = vld [vmem:[#allocation5 + $0x78] sm:$0xff]
    %v77 = vld [vmem:[#allocation5 + $0x80] sm:$0xff]
    %v78 = vld [vmem:[#allocation5 + $0x88] sm:$0xff]
    %v79 = vld [vmem:[#allocation5 + $0x90] sm:$0xff]
    %v80 = vld [vmem:[#allocation5 + $0x98] sm:$0xff]
    %v81 = vld [vmem:[#allocation5 + $0xa0] sm:$0xff]
    %v82 = vld [vmem:[#allocation5 + $0xa8] sm:$0xff]
    %v83 = vld [vmem:[#allocation5 + $0xb0] sm:$0xff]
    %v84 = vld [vmem:[#allocation5 + $0xb8] sm:$0xff]
    %v85 = vld [vmem:[#allocation5 + $0xc0] sm:$0xff]
    %v86 = vld [vmem:[#allocation5 + $0xc8] sm:$0xff]
    %v87 = vld [vmem:[#allocation5 + $0xd0] sm:$0xff]
    %v88 = vld [vmem:[#allocation5 + $0xd8] sm:$0xff]
    %v89 = vld [vmem:[#allocation5 + $0xe0] sm:$0xff]
    %v90 = vld [vmem:[#allocation5 + $0xe8] sm:$0xff]
    %v91 = vld [vmem:[#allocation5 + $0xf0] sm:$0xff]
    %v92 = vld [vmem:[#allocation5 + $0xf8] sm:$0xff]
    %v93 = vld [vmem:[#allocation5 + $0x100] sm:$0xff]
    %v94 = vld [vmem:[#allocation5 + $0x108] sm:$0xff]
    %v95 = vld [vmem:[#allocation5 + $0x110] sm:$0xff]
    %v96 = vld [vmem:[#allocation5 + $0x118] sm:$0xff]
    %v97 = vld [vmem:[#allocation5 + $0x120] sm:$0xff]
    %v98 = vld [vmem:[#allocation5 + $0x128] sm:$0xff]
    %v99 = vld [vmem:[#allocation5 + $0x130] sm:$0xff]
    %v100 = vld [vmem:[#allocation5 + $0x138] sm:$0xff]
    %v101 = vld [vmem:[#allocation5 + $0x140] sm:$0xff]
    %v102 = vld [vmem:[#allocation5 + $0x148] sm:$0xff]
    %v103 = vld [vmem:[#allocation5 + $0x150] sm:$0xff]
    %v104 = vld [vmem:[#allocation5 + $0x158] sm:$0xff]
    %v105 = vld [vmem:[#allocation5 + $0x160] sm:$0xff]
    %v106 = vld [vmem:[#allocation5 + $0x168] sm:$0xff]
    %v107 = vld [vmem:[#allocation5 + $0x170] sm:$0xff]
    %v108 = vld [vmem:[#allocation5 + $0x178] sm:$0xff]
    %v109 = vld [vmem:[%s2] sm:$0x7]
    %v111 = vlaneseq
    %v112 = vshrl.u32 %v111, 7
    %v113 = vsub.s32 0, %v112
    %v114 = vrot.slane %v109, %v113
    %v115 = vlaneseq
    %v116 = vshrl.u32 %v115, 7
    %v117 = vsub.s32 1, %v116
    %v118 = vrot.slane %v109, %v117
    %v119 = vlaneseq
    %v120 = vshrl.u32 %v119, 7
    %v121 = vsub.s32 2, %v120
    %v122 = vrot.slane %v109, %v121
    %126 = vmatprep.subr.mxu0 %v62
    %127 = vmatpush1.msra.mxu0 %v61
    %128 = vmatprep.subr.mxu0 %v65
    %129 = vmatpush1.msra.mxu0 %v64
    %130 = vmatprep.subr.mxu0 %v68
    %131 = vmatpush1.msra.mxu0 %v67
    %132 = vmatprep.subr.mxu0 %v71
    %133 = vmatpush1.msra.mxu0 %v70
    %134 = vmatprep.subr.mxu0 %v74
    %135 = vmatpush1.msra.mxu0 %v73
    %136 = vmatprep.subr.mxu0 %v77
    %137 = vmatpush1.msra.mxu0 %v76
    %138 = vmatprep.subr.mxu0 %v80
    %139 = vmatpush1.msra.mxu0 %v79
    %140 = vmatprep.subr.mxu0 %v83
    %141 = vmatpush1.msra.mxu0 %v82
    %142 = vmatprep.subr.mxu0 %v86
    %143 = vmatpush1.msra.mxu0 %v85
    %144 = vmatprep.subr.mxu0 %v89
    %145 = vmatpush1.msra.mxu0 %v88
    %146 = vmatprep.subr.mxu0 %v92
    %147 = vmatpush1.msra.mxu0 %v91
    %148 = vmatprep.subr.mxu0 %v95
    %149 = vmatpush1.msra.mxu0 %v94
    %150 = vmatprep.subr.mxu0 %v98
    %151 = vmatpush1.msra.mxu0 %v97
    %152 = vmatprep.subr.mxu0 %v101
    %153 = vmatpush1.msra.mxu0 %v100
    %154 = vmatprep.subr.mxu0 %v104
    %155 = vmatpush1.msra.mxu0 %v103
    %156 = vmatprep.subr.mxu0 %v107
    %157 = vmatpush1.msra.mxu0 %v106
    %158 = vmatprep.subr.mxu0 0.0
    %159 = vmatpush1.msra.mxu0 0.0
    %160 = vmatprep.subr.mxu0 0.0
    %161 = vmatpush1.msra.mxu0 0.0
    %162 = vmatprep.subr.mxu0 0.0
    %163 = vmatpush1.msra.mxu0 0.0
    %164 = vmatprep.subr.mxu0 0.0
    %165 = vmatpush1.msra.mxu0 0.0
    %166 = vmatprep.subr.mxu0 0.0
    %167 = vmatpush1.msra.mxu0 0.0
    %168 = vmatprep.subr.mxu0 0.0
    %169 = vmatpush1.msra.mxu0 0.0
    %170 = vmatprep.subr.mxu0 0.0
    %171 = vmatpush1.msra.mxu0 0.0
    %172 = vmatprep.subr.mxu0 0.0
    %173 = vmatpush1.msra.mxu0 0.0
    %174 = vmatprep.subr.mxu0 0.0
    %175 = vmatpush1.msra.mxu0 0.0
    %176 = vmatprep.subr.mxu0 0.0
    %177 = vmatpush1.msra.mxu0 0.0
    %178 = vmatprep.subr.mxu0 0.0
    %179 = vmatpush1.msra.mxu0 0.0
    %180 = vmatprep.subr.mxu0 0.0
    %181 = vmatpush1.msra.mxu0 0.0
    %182 = vmatprep.subr.mxu0 0.0
    %183 = vmatpush1.msra.mxu0 0.0
    %184 = vmatprep.subr.mxu0 0.0
    %185 = vmatpush1.msra.mxu0 0.0
    %186 = vmatprep.subr.mxu0 0.0
    %187 = vmatpush1.msra.mxu0 0.0
    %188 = vmatprep.subr.mxu0 0.0
    %189 = vmatpush1.msra.mxu0 0.0
    %190 = vmatprep.mubr.f32.mxu0 0.0
    %191 = vmatmul.mubr.f32.gmra.mrb[0].mxu0 %v60
    %v192 = vpop.f32.mrb[0].mxu0
    %v193 = vadd.f32 %v114, %v192
    %v194 = vpop.f32.mrb[0].mxu0
    %v195 = vadd.f32 %v118, %v194
    %196 = vdwg.mxu0
    %197 = vmatprep.subr.mxu0 0.0
    %198 = vmatpush1.msra.mxu0 %v63
    %199 = vmatprep.subr.mxu0 0.0
    %200 = vmatpush1.msra.mxu0 %v66
    %201 = vmatprep.subr.mxu0 0.0
    %202 = vmatpush1.msra.mxu0 %v69
    %203 = vmatprep.subr.mxu0 0.0
    %204 = vmatpush1.msra.mxu0 %v72
    %205 = vmatprep.subr.mxu0 0.0
    %206 = vmatpush1.msra.mxu0 %v75
    %207 = vmatprep.subr.mxu0 0.0
    %208 = vmatpush1.msra.mxu0 %v78
    %209 = vmatprep.subr.mxu0 0.0
    %210 = vmatpush1.msra.mxu0 %v81
    %211 = vmatprep.subr.mxu0 0.0
    %212 = vmatpush1.msra.mxu0 %v84
    %213 = vmatprep.subr.mxu0 0.0
    %214 = vmatpush1.msra.mxu0 %v87
    %215 = vmatprep.subr.mxu0 0.0
    %216 = vmatpush1.msra.mxu0 %v90
    %217 = vmatprep.subr.mxu0 0.0
    %218 = vmatpush1.msra.mxu0 %v93
    %219 = vmatprep.subr.mxu0 0.0
    %220 = vmatpush1.msra.mxu0 %v96
    %221 = vmatprep.subr.mxu0 0.0
    %222 = vmatpush1.msra.mxu0 %v99
    %223 = vmatprep.subr.mxu0 0.0
    %224 = vmatpush1.msra.mxu0 %v102
    %225 = vmatprep.subr.mxu0 0.0
    %226 = vmatpush1.msra.mxu0 %v105
    %227 = vmatprep.subr.mxu0 0.0
    %228 = vmatpush1.msra.mxu0 %v108
    %229 = vmatprep.subr.mxu0 0.0
    %230 = vmatpush1.msra.mxu0 0.0
    %231 = vmatprep.subr.mxu0 0.0
    %232 = vmatpush1.msra.mxu0 0.0
    %233 = vmatprep.subr.mxu0 0.0
    %234 = vmatpush1.msra.mxu0 0.0
    %235 = vmatprep.subr.mxu0 0.0
    %236 = vmatpush1.msra.mxu0 0.0
    %237 = vmatprep.subr.mxu0 0.0
    %238 = vmatpush1.msra.mxu0 0.0
    %239 = vmatprep.subr.mxu0 0.0
    %240 = vmatpush1.msra.mxu0 0.0
    %241 = vmatprep.subr.mxu0 0.0
    %242 = vmatpush1.msra.mxu0 0.0
    %243 = vmatprep.subr.mxu0 0.0
    %244 = vmatpush1.msra.mxu0 0.0
    %245 = vmatprep.subr.mxu0 0.0
    %246 = vmatpush1.msra.mxu0 0.0
    %247 = vmatprep.subr.mxu0 0.0
    %248 = vmatpush1.msra.mxu0 0.0
    %249 = vmatprep.subr.mxu0 0.0
    %250 = vmatpush1.msra.mxu0 0.0
    %251 = vmatprep.subr.mxu0 0.0
    %252 = vmatpush1.msra.mxu0 0.0
    %253 = vmatprep.subr.mxu0 0.0
    %254 = vmatpush1.msra.mxu0 0.0
    %255 = vmatprep.subr.mxu0 0.0
    %256 = vmatpush1.msra.mxu0 0.0
    %257 = vmatprep.subr.mxu0 0.0
    %258 = vmatpush1.msra.mxu0 0.0
    %259 = vmatprep.subr.mxu0 0.0
    %260 = vmatpush1.msra.mxu0 0.0
    %261 = vmatprep.mubr.f32.mxu0 0.0
    %262 = vmatmul.mubr.f32.gmra.mrb[0].mxu0 %v60
    %v263 = vpop.f32.mrb[0].mxu0
    %v264 = vadd.f32 %v122, %v263
    %v265 = vpop.f32.mrb[0].mxu0
    %266 = vdwg.mxu0
    %v267 = vmul.f32 %v193, %v193
    %v268 = vmul.f32 %v195, %v195
    %v269 = vmul.f32 %v264, %v264
    %v270 = vld [vmem:[#allocation7] sm:$0xff]
    %v271 = vld [vmem:[#allocation7 + $0x8] sm:$0xff]
    %v272 = vld [vmem:[#allocation7 + $0x10] sm:$0xff]
    %v273 = vld [vmem:[#allocation7 + $0x18] sm:$0xff]
    %v274 = vld [vmem:[#allocation7 + $0x20] sm:$0xff]
    %v275 = vld [vmem:[#allocation7 + $0x28] sm:$0xff]
    %v276 = vld [vmem:[#allocation7 + $0x30] sm:$0xff]
    %v277 = vld [vmem:[#allocation7 + $0x38] sm:$0xff]
    %v278 = vld [vmem:[#allocation7 + $0x40] sm:$0xff]
    %v279 = vld [vmem:[#allocation7 + $0x48] sm:$0xff]
    %v280 = vld [vmem:[#allocation7 + $0x50] sm:$0xff]
    %v281 = vld [vmem:[#allocation7 + $0x58] sm:$0xff]
    %v282 = vld [vmem:[#allocation7 + $0x60] sm:$0xff]
    %v283 = vld [vmem:[#allocation7 + $0x68] sm:$0xff]
    %v284 = vld [vmem:[#allocation7 + $0x70] sm:$0xff]
    %v285 = vld [vmem:[#allocation7 + $0x78] sm:$0xff]
    %v286 = vld [vmem:[#allocation7 + $0x80] sm:$0xff]
    %v287 = vld [vmem:[#allocation7 + $0x88] sm:$0xff]
    %v288 = vld [vmem:[#allocation7 + $0x90] sm:$0xff]
    %v289 = vld [vmem:[#allocation7 + $0x98] sm:$0xff]
    %v290 = vld [vmem:[#allocation7 + $0xa0] sm:$0xff]
    %v291 = vld [vmem:[#allocation7 + $0xa8] sm:$0xff]
    %v292 = vld [vmem:[#allocation7 + $0xb0] sm:$0xff]
    %v293 = vld [vmem:[#allocation7 + $0xb8] sm:$0xff]
    %v294 = vld [vmem:[#allocation7 + $0xc0] sm:$0xff]
    %v295 = vld [vmem:[#allocation7 + $0xc8] sm:$0xff]
    %v296 = vld [vmem:[#allocation7 + $0xd0] sm:$0xff]
    %v297 = vld [vmem:[#allocation7 + $0xd8] sm:$0xff]
    %v298 = vld [vmem:[#allocation7 + $0xe0] sm:$0xff]
    %v299 = vld [vmem:[#allocation7 + $0xe8] sm:$0xff]
    %v300 = vld [vmem:[#allocation7 + $0xf0] sm:$0xff]
    %v301 = vld [vmem:[#allocation7 + $0xf8] sm:$0xff]
    %v302 = vld [vmem:[#allocation7 + $0x100] sm:$0xff]
    %v303 = vld [vmem:[#allocation7 + $0x108] sm:$0xff]
    %v304 = vld [vmem:[#allocation7 + $0x110] sm:$0xff]
    %v305 = vld [vmem:[#allocation7 + $0x118] sm:$0xff]
    %v306 = vld [vmem:[#allocation7 + $0x120] sm:$0xff]
    %v307 = vld [vmem:[#allocation7 + $0x128] sm:$0xff]
    %v308 = vld [vmem:[#allocation7 + $0x130] sm:$0xff]
    %v309 = vld [vmem:[#allocation7 + $0x138] sm:$0xff]
    %v310 = vld [vmem:[#allocation7 + $0x140] sm:$0xff]
    %v311 = vld [vmem:[#allocation7 + $0x148] sm:$0xff]
    %v312 = vld [vmem:[#allocation7 + $0x150] sm:$0xff]
    %v313 = vld [vmem:[#allocation7 + $0x158] sm:$0xff]
    %v314 = vld [vmem:[#allocation7 + $0x160] sm:$0xff]
    %v315 = vld [vmem:[#allocation7 + $0x168] sm:$0xff]
    %v316 = vld [vmem:[#allocation7 + $0x170] sm:$0xff]
    %v317 = vld [vmem:[#allocation7 + $0x178] sm:$0xff]
    %v318 = vld [vmem:[#allocation7 + $0x180] sm:$0xff]
    %v319 = vld [vmem:[#allocation7 + $0x188] sm:$0xff]
    %v320 = vld [vmem:[#allocation7 + $0x190] sm:$0xff]
    %v321 = vld [vmem:[#allocation7 + $0x198] sm:$0xff]
    %v322 = vld [vmem:[#allocation7 + $0x1a0] sm:$0xff]
    %v323 = vld [vmem:[#allocation7 + $0x1a8] sm:$0xff]
    %v324 = vld [vmem:[#allocation7 + $0x1b0] sm:$0xff]
    %v325 = vld [vmem:[#allocation7 + $0x1b8] sm:$0xff]
    %v326 = vld [vmem:[#allocation7 + $0x1c0] sm:$0xff]
    %v327 = vld [vmem:[#allocation7 + $0x1c8] sm:$0xff]
    %v328 = vld [vmem:[#allocation7 + $0x1d0] sm:$0xff]
    %v329 = vld [vmem:[#allocation7 + $0x1d8] sm:$0xff]
    %v330 = vld [vmem:[#allocation7 + $0x1e0] sm:$0xff]
    %v331 = vld [vmem:[#allocation7 + $0x1e8] sm:$0xff]
    %v332 = vld [vmem:[#allocation7 + $0x1f0] sm:$0xff]
    %v333 = vld [vmem:[#allocation7 + $0x1f8] sm:$0xff]
    %v334 = vld [vmem:[%s4] sm:$0x1]
    %v336 = vlaneseq
    %v337 = vshrl.u32 %v336, 7
    %v338 = vsub.s32 0, %v337
    %v339 = vrot.slane %v334, %v338
    %341 = vmatprep.subr.mxu0 0.0
    %342 = vmatpush1.msra.mxu0 %v270
    %343 = vmatprep.subr.mxu0 0.0
    %344 = vmatpush1.msra.mxu0 %v271
    %345 = vmatprep.subr.mxu0 0.0
    %346 = vmatpush1.msra.mxu0 %v272
    %347 = vmatprep.subr.mxu0 0.0
    %348 = vmatpush1.msra.mxu0 %v273
    %349 = vmatprep.subr.mxu0 0.0
    %350 = vmatpush1.msra.mxu0 %v274
    %351 = vmatprep.subr.mxu0 0.0
    %352 = vmatpush1.msra.mxu0 %v275
    %353 = vmatprep.subr.mxu0 0.0
    %354 = vmatpush1.msra.mxu0 %v276
    %355 = vmatprep.subr.mxu0 0.0
    %356 = vmatpush1.msra.mxu0 %v277
    %357 = vmatprep.subr.mxu0 0.0
    %358 = vmatpush1.msra.mxu0 %v278
    %359 = vmatprep.subr.mxu0 0.0
    %360 = vmatpush1.msra.mxu0 %v279
    %361 = vmatprep.subr.mxu0 0.0
    %362 = vmatpush1.msra.mxu0 %v280
    %363 = vmatprep.subr.mxu0 0.0
    %364 = vmatpush1.msra.mxu0 %v281
    %365 = vmatprep.subr.mxu0 0.0
    %366 = vmatpush1.msra.mxu0 %v282
    %367 = vmatprep.subr.mxu0 0.0
    %368 = vmatpush1.msra.mxu0 %v283
    %369 = vmatprep.subr.mxu0 0.0
    %370 = vmatpush1.msra.mxu0 %v284
    %371 = vmatprep.subr.mxu0 0.0
    %372 = vmatpush1.msra.mxu0 %v285
    %373 = vmatprep.subr.mxu0 0.0
    %374 = vmatpush1.msra.mxu0 %v286
    %375 = vmatprep.subr.mxu0 0.0
    %376 = vmatpush1.msra.mxu0 %v287
    %377 = vmatprep.subr.mxu0 0.0
    %378 = vmatpush1.msra.mxu0 %v288
    %379 = vmatprep.subr.mxu0 0.0
    %380 = vmatpush1.msra.mxu0 %v289
    %381 = vmatprep.subr.mxu0 0.0
    %382 = vmatpush1.msra.mxu0 %v290
    %383 = vmatprep.subr.mxu0 0.0
    %384 = vmatpush1.msra.mxu0 %v291
    %385 = vmatprep.subr.mxu0 0.0
    %386 = vmatpush1.msra.mxu0 %v292
    %387 = vmatprep.subr.mxu0 0.0
    %388 = vmatpush1.msra.mxu0 %v293
    %389 = vmatprep.subr.mxu0 0.0
    %390 = vmatpush1.msra.mxu0 %v294
    %391 = vmatprep.subr.mxu0 0.0
    %392 = vmatpush1.msra.mxu0 %v295
    %393 = vmatprep.subr.mxu0 0.0
    %394 = vmatpush1.msra.mxu0 %v296
    %395 = vmatprep.subr.mxu0 0.0
    %396 = vmatpush1.msra.mxu0 %v297
    %397 = vmatprep.subr.mxu0 0.0
    %398 = vmatpush1.msra.mxu0 %v298
    %399 = vmatprep.subr.mxu0 0.0
    %400 = vmatpush1.msra.mxu0 %v299
    %401 = vmatprep.subr.mxu0 0.0
    %402 = vmatpush1.msra.mxu0 %v300
    %403 = vmatprep.subr.mxu0 0.0
    %404 = vmatpush1.msra.mxu0 %v301
    %405 = vmatprep.mubr.f32.mxu0 %v268
    %406 = vmatmul.mubr.f32.gmra.mrb[0].mxu0 %v267
    %v407 = vpop.f32.mrb[0].mxu0
    %v408 = vadd.f32 %v339, %v407
    %v409 = vpop.f32.mrb[0].mxu0
    %410 = vdwg.mxu0
    %411 = vmatprep.subr.mxu0 0.0
    %412 = vmatpush1.msra.mxu0 %v302
    %413 = vmatprep.subr.mxu0 0.0
    %414 = vmatpush1.msra.mxu0 %v303
    %415 = vmatprep.subr.mxu0 0.0
    %416 = vmatpush1.msra.mxu0 %v304
    %417 = vmatprep.subr.mxu0 0.0
    %418 = vmatpush1.msra.mxu0 %v305
    %419 = vmatprep.subr.mxu0 0.0
    %420 = vmatpush1.msra.mxu0 %v306
    %421 = vmatprep.subr.mxu0 0.0
    %422 = vmatpush1.msra.mxu0 %v307
    %423 = vmatprep.subr.mxu0 0.0
    %424 = vmatpush1.msra.mxu0 %v308
    %425 = vmatprep.subr.mxu0 0.0
    %426 = vmatpush1.msra.mxu0 %v309
    %427 = vmatprep.subr.mxu0 0.0
    %428 = vmatpush1.msra.mxu0 %v310
    %429 = vmatprep.subr.mxu0 0.0
    %430 = vmatpush1.msra.mxu0 %v311
    %431 = vmatprep.subr.mxu0 0.0
    %432 = vmatpush1.msra.mxu0 %v312
    %433 = vmatprep.subr.mxu0 0.0
    %434 = vmatpush1.msra.mxu0 %v313
    %435 = vmatprep.subr.mxu0 0.0
    %436 = vmatpush1.msra.mxu0 %v314
    %437 = vmatprep.subr.mxu0 0.0
    %438 = vmatpush1.msra.mxu0 %v315
    %439 = vmatprep.subr.mxu0 0.0
    %440 = vmatpush1.msra.mxu0 %v316
    %441 = vmatprep.subr.mxu0 0.0
    %442 = vmatpush1.msra.mxu0 %v317
    %443 = vmatprep.subr.mxu0 0.0
    %444 = vmatpush1.msra.mxu0 %v318
    %445 = vmatprep.subr.mxu0 0.0
    %446 = vmatpush1.msra.mxu0 %v319
    %447 = vmatprep.subr.mxu0 0.0
    %448 = vmatpush1.msra.mxu0 %v320
    %449 = vmatprep.subr.mxu0 0.0
    %450 = vmatpush1.msra.mxu0 %v321
    %451 = vmatprep.subr.mxu0 0.0
    %452 = vmatpush1.msra.mxu0 %v322
    %453 = vmatprep.subr.mxu0 0.0
    %454 = vmatpush1.msra.mxu0 %v323
    %455 = vmatprep.subr.mxu0 0.0
    %456 = vmatpush1.msra.mxu0 %v324
    %457 = vmatprep.subr.mxu0 0.0
    %458 = vmatpush1.msra.mxu0 %v325
    %459 = vmatprep.subr.mxu0 0.0
    %460 = vmatpush1.msra.mxu0 %v326
    %461 = vmatprep.subr.mxu0 0.0
    %462 = vmatpush1.msra.mxu0 %v327
    %463 = vmatprep.subr.mxu0 0.0
    %464 = vmatpush1.msra.mxu0 %v328
    %465 = vmatprep.subr.mxu0 0.0
    %466 = vmatpush1.msra.mxu0 %v329
    %467 = vmatprep.subr.mxu0 0.0
    %468 = vmatpush1.msra.mxu0 %v330
    %469 = vmatprep.subr.mxu0 0.0
    %470 = vmatpush1.msra.mxu0 %v331
    %471 = vmatprep.subr.mxu0 0.0
    %472 = vmatpush1.msra.mxu0 %v332
    %473 = vmatprep.subr.mxu0 0.0
    %474 = vmatpush1.msra.mxu0 %v333
    %475 = vmatprep.mubr.f32.mxu0 %v60
    %476 = vmatmul.mubr.f32.gmra.mrb[0].mxu0 %v269
    %v477 = vpop.f32.mrb[0].mxu0
    %v478 = vadd.f32 %v408, %v477
    %v479 = vpop.f32.mrb[0].mxu0
    %480 = vdwg.mxu0
    %481 = vst [vmem:[#allocation8] sm:$0xff] %v478
    // Predicated region
    $region34: #{tpu_custom_call.1} parent=1 // pred_check
      _
    $region35: #{tpu_custom_call.1} parent=1 // pred_check_branch
      %483 = sbr.rel (0) target = $region37
    $region36: #{tpu_custom_call.1} parent=1 // pred_region
      %s485 = ssub.s32 128, 128
      %486 = vsyncadd [#allocation4], %s485
      %s488 = sshll.u32 [#allocation8], 4
      %s489 = int_to_ptr.vmem [resolvable:$true] %s488
      %491 = dma.vmem_to_hbm [thread:$0]  %s489, 128, %s5, [#allocation4]
    $region37: #{tpu_custom_call.1} parent=1 // pred_fallthru
      _
    // Predicated region
    $region38: #{tpu_custom_call.1} parent=1 // pred_check
      _
    $region39: #{tpu_custom_call.1} parent=1 // pred_check_branch
      %493 = sbr.rel (0) target = $region41
    $region40: #{tpu_custom_call.1} parent=1 // pred_region
      %494 = dma.done [#allocation4], 128
    $region41: #{tpu_custom_call.1} parent=1 // pred_fallthru
      _
    %495 = vsyncpa [#allocation3], 1
    %496 = vsyncpa [#allocation6], 1
    %497 = vsyncpa [#allocation4], 1

</llo_original>
